<compile_context>
chip_gen: v6e
topology: v6e:2x2x1
jax: 0.10.0
libtpu: 0.0.40
codegen_flags: <defaults>
</compile_context>

<pallas_src>
import jax
import jax.numpy as jnp
from jax.experimental import pallas as pl
from jax.experimental.pallas import tpu as pltpu


def _make_embed_kernel(n_feat, vocab_pads, emb_dims, col_offsets):
    """Builds the fused, vectorized embedding-gather kernel.

    Kernel args (in order):
      idx_ref            : VMEM (b_tile, N) int32   -- this tile's categorical ids
      tab_0 .. tab_{N-1} : VMEM (V_pad_i, E_i)      -- resident embedding tables
      out_ref            : VMEM (b_tile, sum(E_i))  -- fused output rows
    """

    def kernel(idx_ref, *refs):
        out_ref = refs[n_feat]
        idx = idx_ref[...]                                   # (b_tile, N) int32
        bt = idx.shape[0]
        for f in range(n_feat):                              # N is small: static unroll
            v, e, col = vocab_pads[f], emb_dims[f], col_offsets[f]
            tab = refs[f][...]                               # (V_pad_f, E_f)
            idx_f = idx[:, f:f + 1]                          # (b_tile, 1)
            iota = jax.lax.broadcasted_iota(jnp.int32, (bt, v), 1)
            one_hot = (iota == idx_f).astype(tab.dtype)      # (b_tile, V_pad_f)
            # Vectorized gather for the whole tile: one-hot @ table on the MXU.
            part = jnp.dot(one_hot, tab, preferred_element_type=jnp.float32)
            # Dense (b_tile, E_f) slab store into this feature's column slot.
            out_ref[:, col:col + e] = part.astype(out_ref.dtype)

    return kernel


def lazy_embedding(indices, tables, *, b_tile=None):
    """Fused forward pass of terrace LazyEmbedding.

    indices : (B, N) integer array of categorical ids
    tables  : list of N arrays; tables[i] has shape (num_classes[i], embedding_dims[i])
    returns : (B, sum_i embedding_dims[i]) array in the tables' dtype
    """
    B, N = indices.shape
    assert len(tables) == N
    dt = tables[0].dtype
    assert all(t.dtype == dt for t in tables), "all tables must share a dtype"

    emb_dims = tuple(int(t.shape[1]) for t in tables)
    col_offsets = tuple(int(sum(emb_dims[:i])) for i in range(N))
    d_total = int(sum(emb_dims))

    # Pad each vocab to a multiple of 8 (sublane-friendly layout). Padded rows
    # are zero and can never be selected by an in-range index.
    tabs, vocab_pads = [], []
    for t in tables:
        v = int(t.shape[0])
        v_pad = pl.cdiv(v, 8) * 8
        if v_pad != v:
            t = jnp.pad(t, ((0, v_pad - v), (0, 0)))
        tabs.append(t)
        vocab_pads.append(v_pad)
    vocab_pads = tuple(vocab_pads)

    # VMEM-resident table path: budget includes the default 2x block buffering.
    table_bytes = int(sum(t.size * t.dtype.itemsize for t in tabs))
    assert table_bytes <= 8 * 1024 * 1024, (
        "tables too large for the VMEM-resident path; use an HBM row-gather "
        "(pl.Element / manual DMA) formulation instead")

    d_lane = pl.cdiv(d_total, 128) * 128          # lane-padded output width

    # Batch tile: big for pipeline efficiency (per-grid-step overhead ~0.35us),
    # <= ceil(B/2) so the parallel grid keeps >= 2 blocks (v7x has 2 TCs),
    # multiple of 8, and capped so 2x output buffers stay modest in VMEM.
    if b_tile is None:
        b_tile = min(512, max(8, -(-B // 2)))
    b_tile = max(8, (int(b_tile) // 8) * 8)
    while b_tile > 8 and b_tile * d_lane * dt.itemsize > (8 << 20):
        b_tile //= 2
    b_tile = max(8, (b_tile // 8) * 8)

    b_pad = pl.cdiv(B, b_tile) * b_tile
    idx = indices.astype(jnp.int32)
    if b_pad != B:
        # Padded rows look up row 0 (harmless) and are sliced off afterwards.
        idx = jnp.pad(idx, ((0, b_pad - B), (0, 0)))
    n_blocks = b_pad // b_tile

    # Explicit scoped-VMEM budget: 2x tables (double-buffered constant blocks)
    # + 2x index tile (lanes pad to 128) + 2x output tile + margin. Kept well
    # under v7x's 64 MiB physical VMEM; v5e/v6e have 128 MiB physical.
    vmem_need = (2 * table_bytes
                 + 2 * b_tile * 128 * 4
                 + 2 * b_tile * d_lane * dt.itemsize
                 + (2 << 20))
    vmem_limit = int(min(max(vmem_need, 16 << 20), 48 << 20))

    kernel = _make_embed_kernel(N, vocab_pads, emb_dims, col_offsets)

    flops = int(sum(2 * b_pad * vocab_pads[f] * emb_dims[f] for f in range(N)))
    bytes_accessed = int(idx.size * 4 + table_bytes + b_pad * d_total * dt.itemsize)

    out = pl.pallas_call(
        kernel,
        out_shape=jax.ShapeDtypeStruct((b_pad, d_total), dt),
        grid=(n_blocks,),
        in_specs=[pl.BlockSpec((b_tile, N), lambda b: (b, 0))] + [
            # each table is one full VMEM block, resident across the whole grid
            pl.BlockSpec((int(t.shape[0]), int(t.shape[1])), lambda b: (0, 0))
            for t in tabs
        ],
        out_specs=pl.BlockSpec((b_tile, d_total), lambda b: (b, 0)),
        compiler_params=pltpu.CompilerParams(
            dimension_semantics=("parallel",),     # batch tiles are independent
            vmem_limit_bytes=vmem_limit),
        cost_estimate=pl.CostEstimate(
            flops=flops, transcendentals=0, bytes_accessed=bytes_accessed),
    )(idx, *tabs)

    return out[:B] if b_pad != B else out


if __name__ == "__main__":
    # Small, deterministic example consistent with the module:
    #   batch B=12, N=3 categorical features, embedding_dims (int) = 32
    B = 12
    num_classes = (16, 24, 10)       # x.num_classes
    embedding_dim = 32               # self.embedding_dims as an int
    embedding_dims = [embedding_dim] * len(num_classes)

    key = jax.random.PRNGKey(0)
    k_idx, *k_tabs = jax.random.split(key, 1 + len(num_classes))

    # Categorical indices (B, N), each column bounded by its num_classes.
    cols = []
    kk = k_idx
    for v in num_classes:
        kk, sub = jax.random.split(kk)
        cols.append(jax.random.randint(sub, (B, 1), 0, v, dtype=jnp.int32))
    indices = jnp.concatenate(cols, axis=-1)                 # (B, N) int32

    # Deterministic "nn.Embedding" weights: N(0, 1), matching PyTorch default init.
    tables = [
        jax.random.normal(k_tabs[i], (num_classes[i], embedding_dims[i]),
                          dtype=jnp.float32)
        for i in range(len(num_classes))
    ]

    out = jax.block_until_ready(lazy_embedding(indices, tables))

    # Reference check in plain JAX (pure gather) to confirm kernel semantics.
    ref = jnp.concatenate(
        [tables[i][indices[:, i]] for i in range(len(num_classes))], axis=-1)
    assert out.shape == (B, sum(embedding_dims)), out.shape
    assert jnp.allclose(out, ref, atol=1e-6), "mismatch vs reference gather"

    print("KERNEL_OK")
</pallas_src>

<mosaic_0001>
module attributes {stable_mosaic.version = 11 : i64} {
  func.func @kernel(%arg0: i32, %arg1: memref<8x3xi32, #tpu.memory_space<vmem>>, %arg2: memref<16x32xf32, #tpu.memory_space<vmem>>, %arg3: memref<24x32xf32, #tpu.memory_space<vmem>>, %arg4: memref<16x32xf32, #tpu.memory_space<vmem>>, %arg5: memref<8x96xf32, #tpu.memory_space<vmem>>) attributes {dimension_semantics = [#tpu.dimension_semantics<parallel>], iteration_bounds = array<i64: 2>, scalar_prefetch = 0 : i64, scratch_operands = 0 : i64, tpu.core_type = #tpu.core_type<tc>, window_params = [{transform_indices = @transform_0, window_bounds = array<i64: 8, 3>}, {pipeline_mode = #tpu.pipeline_mode<synchronous>, transform_indices = @transform_1, window_bounds = array<i64: 16, 32>}, {pipeline_mode = #tpu.pipeline_mode<synchronous>, transform_indices = @transform_2, window_bounds = array<i64: 24, 32>}, {pipeline_mode = #tpu.pipeline_mode<synchronous>, transform_indices = @transform_3, window_bounds = array<i64: 16, 32>}, {transform_indices = @transform_4, window_bounds = array<i64: 8, 96>}]} {
    %c0 = arith.constant 0 : index
    %c0_0 = arith.constant 0 : index
    %0 = vector.load %arg1[%c0, %c0_0] : memref<8x3xi32, #tpu.memory_space<vmem>>, vector<8x3xi32>
    %c0_1 = arith.constant 0 : index
    %c0_2 = arith.constant 0 : index
    %1 = vector.load %arg2[%c0_1, %c0_2] : memref<16x32xf32, #tpu.memory_space<vmem>>, vector<16x32xf32>
    %2 = vector.extract_strided_slice %0 {offsets = [0, 0], sizes = [8, 1], strides = [1, 1]} : vector<8x3xi32> to vector<8x1xi32>
    %3 = tpu.iota {dimensions = array<i32: 1>} : vector<8x16xi32>
    %4 = vector.broadcast %2 : vector<8x1xi32> to vector<8x16xi32>
    %5 = arith.cmpi eq, %3, %4 : vector<8x16xi32>
    %6 = arith.extui %5 : vector<8x16xi1> to vector<8x16xi32>
    %7 = arith.sitofp %6 : vector<8x16xi32> to vector<8x16xf32>
    %cst = arith.constant dense<0.000000e+00> : vector<8x32xf32>
    %8 = tpu.matmul %7, %1, %cst {dimension_numbers = #tpu.dot_dimension_numbers<[1], [0], [0], [1], [0, 0, 1, 1], [], []>} : vector<8x16xf32>, vector<16x32xf32>, vector<8x32xf32> -> vector<8x32xf32>
    %c0_3 = arith.constant 0 : index
    %c0_4 = arith.constant 0 : index
    %9 = vector.load %arg5[%c0_3, %c0_4] : memref<8x96xf32, #tpu.memory_space<vmem>>, vector<8x32xf32>
    tpu.vector_store %arg5[%c0_3, %c0_4], %8 {strides = array<i32>} : memref<8x96xf32, #tpu.memory_space<vmem>>, vector<8x32xf32>,
    %c0_5 = arith.constant 0 : index
    %c0_6 = arith.constant 0 : index
    %10 = vector.load %arg3[%c0_5, %c0_6] : memref<24x32xf32, #tpu.memory_space<vmem>>, vector<24x32xf32>
    %11 = vector.extract_strided_slice %0 {offsets = [0, 1], sizes = [8, 1], strides = [1, 1]} : vector<8x3xi32> to vector<8x1xi32>
    %12 = tpu.iota {dimensions = array<i32: 1>} : vector<8x24xi32>
    %13 = vector.broadcast %11 : vector<8x1xi32> to vector<8x24xi32>
    %14 = arith.cmpi eq, %12, %13 : vector<8x24xi32>
    %15 = arith.extui %14 : vector<8x24xi1> to vector<8x24xi32>
    %16 = arith.sitofp %15 : vector<8x24xi32> to vector<8x24xf32>
    %cst_7 = arith.constant dense<0.000000e+00> : vector<8x32xf32>
    %17 = tpu.matmul %16, %10, %cst_7 {dimension_numbers = #tpu.dot_dimension_numbers<[1], [0], [0], [1], [0, 0, 1, 1], [], []>} : vector<8x24xf32>, vector<24x32xf32>, vector<8x32xf32> -> vector<8x32xf32>
    %c0_8 = arith.constant 0 : index
    %c32 = arith.constant 32 : index
    %18 = vector.load %arg5[%c0_8, %c32] : memref<8x96xf32, #tpu.memory_space<vmem>>, vector<8x32xf32>
    tpu.vector_store %arg5[%c0_8, %c32], %17 {strides = array<i32>} : memref<8x96xf32, #tpu.memory_space<vmem>>, vector<8x32xf32>,
    %c0_9 = arith.constant 0 : index
    %c0_10 = arith.constant 0 : index
    %19 = vector.load %arg4[%c0_9, %c0_10] : memref<16x32xf32, #tpu.memory_space<vmem>>, vector<16x32xf32>
    %20 = vector.extract_strided_slice %0 {offsets = [0, 2], sizes = [8, 1], strides = [1, 1]} : vector<8x3xi32> to vector<8x1xi32>
    %21 = tpu.iota {dimensions = array<i32: 1>} : vector<8x16xi32>
    %22 = vector.broadcast %20 : vector<8x1xi32> to vector<8x16xi32>
    %23 = arith.cmpi eq, %21, %22 : vector<8x16xi32>
    %24 = arith.extui %23 : vector<8x16xi1> to vector<8x16xi32>
    %25 = arith.sitofp %24 : vector<8x16xi32> to vector<8x16xf32>
    %cst_11 = arith.constant dense<0.000000e+00> : vector<8x32xf32>
    %26 = tpu.matmul %25, %19, %cst_11 {dimension_numbers = #tpu.dot_dimension_numbers<[1], [0], [0], [1], [0, 0, 1, 1], [], []>} : vector<8x16xf32>, vector<16x32xf32>, vector<8x32xf32> -> vector<8x32xf32>
    %c0_12 = arith.constant 0 : index
    %c64 = arith.constant 64 : index
    %27 = vector.load %arg5[%c0_12, %c64] : memref<8x96xf32, #tpu.memory_space<vmem>>, vector<8x32xf32>
    tpu.vector_store %arg5[%c0_12, %c64], %26 {strides = array<i32>} : memref<8x96xf32, #tpu.memory_space<vmem>>, vector<8x32xf32>,
    return
  }
  func.func @transform_0(%arg0: i32) -> (i32, i32) {
    %c0_i32 = arith.constant 0 : i32
    %c0_i32_0 = arith.constant 0 : i32
    return %arg0, %c0_i32 : i32, i32
  }
  func.func @transform_1(%arg0: i32) -> (i32, i32) {
    %c0_i32 = arith.constant 0 : i32
    %c0_i32_0 = arith.constant 0 : i32
    %c0_i32_1 = arith.constant 0 : i32
    return %c0_i32, %c0_i32_0 : i32, i32
  }
  func.func @transform_2(%arg0: i32) -> (i32, i32) {
    %c0_i32 = arith.constant 0 : i32
    %c0_i32_0 = arith.constant 0 : i32
    %c0_i32_1 = arith.constant 0 : i32
    return %c0_i32, %c0_i32_0 : i32, i32
  }
  func.func @transform_3(%arg0: i32) -> (i32, i32) {
    %c0_i32 = arith.constant 0 : i32
    %c0_i32_0 = arith.constant 0 : i32
    %c0_i32_1 = arith.constant 0 : i32
    return %c0_i32, %c0_i32_0 : i32, i32
  }
  func.func @transform_4(%arg0: i32) -> (i32, i32) {
    %c0_i32 = arith.constant 0 : i32
    %c0_i32_0 = arith.constant 0 : i32
    return %arg0, %c0_i32 : i32, i32
  }
}

</mosaic_0001>

<llo_original>
// kernel: tpu_custom_call.1
$region0: #{tpu_custom_call.1}
  #allocation0 [shape = 'u32[]', space=smem, size = 0x4, offset = 0x4, fixed_abs, tag = 'smem constant byte address 0x4 - core index']
  #allocation1 [shape = 'u32[144,128]{1,0:T(1,128)}', space=vmem, size = 0x12000, scoped, tag = 'internal scratch']
  %s0 = inlined_call_operand.vmem [shape: s32[16,3], index: 0, kind: input, shape index: {}]
  %s1 = inlined_call_operand.vmem [shape: f32[16,32], index: 1, kind: input, shape index: {}]
  %s2 = inlined_call_operand.hbm [shape: f32[24,32], index: 2, kind: input, shape index: {}]
  %s3 = inlined_call_operand.hbm [shape: f32[16,32], index: 3, kind: input, shape index: {}]
  %s4 = inlined_call_operand.hbm [shape: f32[16,96], index: 4, kind: output, shape index: {}]
  %s5 = sld [smem:[#allocation0]]
  $region57: #{tpu_custom_call.1} parent=0
    _
  %s7 = ssub.s32 1, %s5
  %s8 = scalar_select 0, %s7, %s5
  $region1: #{tpu_custom_call.1} parent=0
    #allocation2 [shape = 'u8[12288]{0}', space=vmem, size = 0x3000, scoped, tag = 'input window, operand 2, single buffered']
    #allocation3 [shape = 's32[2]{0}', space=sflag, size = 0x8, scoped, tag = 'scoped memory for tpu_custom_call.1']
    #allocation4 [shape = 's32[2]{0}', space=sflag, size = 0x8, scoped, tag = 'scoped memory for tpu_custom_call.1']
    #allocation5 [shape = 'u8[8192]{0}', space=vmem, size = 0x2000, scoped, tag = 'input window, operand 3, single buffered']
    #allocation6 [shape = 's32[1]{0}', space=sflag, size = 0x4, scoped, tag = 'scoped memory for tpu_custom_call.1']
    #allocation7 [shape = 'u8[8192]{0}', space=vmem, size = 0x2000, scoped, tag = 'output window, operand 0']
    %9 = vsyncpa [#allocation3], 0
    %10 = vsyncpa [#allocation6], 0
    %11 = vsyncpa [#allocation4], 0
    %s12 = scalar_lea.sflag [#allocation4], 1
    %13 = vsyncpa %s12, 0
    loop: start=0, step=1, limit=4
    $region2: #{tpu_custom_call.1} parent=1 // loop_pre_header
      _
    $region3: #{tpu_custom_call.1} parent=1 // loop_header
      %s15 = sphi 0, %s19
      %p16 = scmp.ge.s32.totalorder %s15, 4
      %s25 = sphi 0, %s27
      %s28 = sphi 0, %s25
      %s29 = sphi 0, %s28
      %s45 = sphi 0, %s29
      %s49 = sphi 0, %s49
      %s51 = sphi 0, %s49
      %s52 = sphi 0, %s51
      %s66 = sphi 0, %s52
      %s70 = sphi 0, %s70
      %s72 = sphi 0, %s70
      %s73 = sphi 0, %s72
      %s87 = sphi 0, %s73
      %s91 = sphi 0, %s91
      %s93 = sphi 0, %s91
      %s94 = sphi 0, %s93
      %s108 = sphi 0, %s94
      %s114 = sphi 0, %s116
      %s117 = sphi 0, %s114
      %s118 = sphi 0, %s117
      %s134 = sphi 0, %s118
    $region4: #{tpu_custom_call.1} parent=1 // loop_header_branch
      %18 = sbr.rel (%p16) target = $region8
    $region5: #{tpu_custom_call.1} parent=1 // loop_body
      %s20 = ssub.s32 %s15, 1
      %s21 = ssub.s32 %s15, 2
      %s22 = sadd.s32 %s15, 1
      %s23 = ssub.s32 %s15, %s22
      %p24 = scmp.eq.s32.totalorder %s23, 0
      %s26 = sadd.s32 %s25, 1
      %s27 = scalar_select %p24, %s25, %s26
      %p30 = pneg %p24
      %p31 = scmp.eq.s32.totalorder %s15, 1
      %p32 = por %p30, %p31
      %p33 = scmp.ne.s32.totalorder %s25, %s28
      %p34 = scmp.eq.s32.totalorder %s15, 0
      %p35 = por %p33, %p34
      %p36 = scmp.ne.s32.totalorder %s25, %s28
      %p37 = scmp.eq.s32.totalorder %s20, 1
      %p38 = por %p36, %p37
      %p39 = scmp.ne.s32.totalorder %s28, %s29
      %p40 = scmp.eq.s32.totalorder %s20, 0
      %p41 = por %p39, %p40
      %p42 = scmp.ne.s32.totalorder %s28, %s29
      %p43 = scmp.eq.s32.totalorder %s21, 1
      %p44 = por %p42, %p43
      %p46 = scmp.ne.s32.totalorder %s29, %s45
      %p47 = scmp.eq.s32.totalorder %s21, 0
      %p48 = por %p46, %p47
      %s50 = sadd.s32 %s49, 1
      %p53 = scmp.eq.s32.totalorder %s15, 1
      %p54 = scmp.ne.s32.totalorder %s49, %s51
      %p55 = scmp.eq.s32.totalorder %s15, 0
      %p56 = por %p54, %p55
      %p57 = scmp.ne.s32.totalorder %s49, %s51
      %p58 = scmp.eq.s32.totalorder %s20, 1
      %p59 = por %p57, %p58
      %p60 = scmp.ne.s32.totalorder %s51, %s52
      %p61 = scmp.eq.s32.totalorder %s20, 0
      %p62 = por %p60, %p61
      %p63 = scmp.ne.s32.totalorder %s51, %s52
      %p64 = scmp.eq.s32.totalorder %s21, 1
      %p65 = por %p63, %p64
      %p67 = scmp.ne.s32.totalorder %s52, %s66
      %p68 = scmp.eq.s32.totalorder %s21, 0
      %p69 = por %p67, %p68
      %s71 = sadd.s32 %s70, 1
      %p74 = scmp.eq.s32.totalorder %s15, 1
      %p75 = scmp.ne.s32.totalorder %s70, %s72
      %p76 = scmp.eq.s32.totalorder %s15, 0
      %p77 = por %p75, %p76
      %p78 = scmp.ne.s32.totalorder %s70, %s72
      %p79 = scmp.eq.s32.totalorder %s20, 1
      %p80 = por %p78, %p79
      %p81 = scmp.ne.s32.totalorder %s72, %s73
      %p82 = scmp.eq.s32.totalorder %s20, 0
      %p83 = por %p81, %p82
      %p84 = scmp.ne.s32.totalorder %s72, %s73
      %p85 = scmp.eq.s32.totalorder %s21, 1
      %p86 = por %p84, %p85
      %p88 = scmp.ne.s32.totalorder %s73, %s87
      %p89 = scmp.eq.s32.totalorder %s21, 0
      %p90 = por %p88, %p89
      %s92 = sadd.s32 %s91, 1
      %p95 = scmp.eq.s32.totalorder %s15, 1
      %p96 = scmp.ne.s32.totalorder %s91, %s93
      %p97 = scmp.eq.s32.totalorder %s15, 0
      %p98 = por %p96, %p97
      %p99 = scmp.ne.s32.totalorder %s91, %s93
      %p100 = scmp.eq.s32.totalorder %s20, 1
      %p101 = por %p99, %p100
      %p102 = scmp.ne.s32.totalorder %s93, %s94
      %p103 = scmp.eq.s32.totalorder %s20, 0
      %p104 = por %p102, %p103
      %p105 = scmp.ne.s32.totalorder %s93, %s94
      %p106 = scmp.eq.s32.totalorder %s21, 1
      %p107 = por %p105, %p106
      %p109 = scmp.ne.s32.totalorder %s94, %s108
      %p110 = scmp.eq.s32.totalorder %s21, 0
      %p111 = por %p109, %p110
      %s112 = ssub.s32 %s15, %s22
      %p113 = scmp.eq.s32.totalorder %s112, 0
      %s115 = sadd.s32 %s114, 1
      %s116 = scalar_select %p113, %s114, %s115
      %p119 = pneg %p113
      %p120 = scmp.eq.s32.totalorder %s15, 1
      %p121 = por %p119, %p120
      %p122 = scmp.ne.s32.totalorder %s114, %s117
      %p123 = scmp.eq.s32.totalorder %s15, 0
      %p124 = por %p122, %p123
      %p125 = scmp.ne.s32.totalorder %s114, %s117
      %p126 = scmp.eq.s32.totalorder %s20, 1
      %p127 = por %p125, %p126
      %p128 = scmp.ne.s32.totalorder %s117, %s118
      %p129 = scmp.eq.s32.totalorder %s20, 0
      %p130 = por %p128, %p129
      %p131 = scmp.ne.s32.totalorder %s117, %s118
      %p132 = scmp.eq.s32.totalorder %s21, 1
      %p133 = por %p131, %p132
      %p135 = scmp.ne.s32.totalorder %s118, %s134
      %p136 = scmp.eq.s32.totalorder %s21, 0
      %p137 = por %p135, %p136
      %p138 = scmp.le.s32.totalorder 1, %s15
      %p139 = scmp.lt.s32.totalorder %s15, 3
      %p140 = pnand %p138, %p139
      %p141 = pneg %p140
      // Predicated region
      $region9: #{tpu_custom_call.1} parent=5 // pred_check
        _
      $region10: #{tpu_custom_call.1} parent=5 // pred_check_branch
        %143 = sbr.rel (%p140) target = $region12
      $region11: #{tpu_custom_call.1} parent=5 // pred_region
        %s144 = ssub.s32 %s15, 1
        // Predicated region
        $region13: #{tpu_custom_call.1} parent=11 // pred_check
          %p145 = pneg %p62
        $region14: #{tpu_custom_call.1} parent=11 // pred_check_branch
          %147 = sbr.rel (%p145) target = $region16
        $region15: #{tpu_custom_call.1} parent=11 // pred_region
          _
        $region16: #{tpu_custom_call.1} parent=11 // pred_fallthru
          _
        // Predicated region
        $region17: #{tpu_custom_call.1} parent=11 // pred_check
          %p148 = pneg %p83
        $region18: #{tpu_custom_call.1} parent=11 // pred_check_branch
          %150 = sbr.rel (%p148) target = $region20
        $region19: #{tpu_custom_call.1} parent=11 // pred_region
          %s152 = ssub.s32 384, 384
          %153 = vsyncadd [#allocation3], %s152
          %s154 = sshll.u32 [#allocation2], 4
          %s155 = int_to_ptr.vmem [resolvable:$true] %s154
          %160 = dma.hbm_to_vmem [thread:$0]  %s2, 384, %s155, [#allocation3], 128, 128, 8
        $region20: #{tpu_custom_call.1} parent=11 // pred_fallthru
          _
        // Predicated region
        $region21: #{tpu_custom_call.1} parent=11 // pred_check
          %p161 = pneg %p104
        $region22: #{tpu_custom_call.1} parent=11 // pred_check_branch
          %163 = sbr.rel (%p161) target = $region24
        $region23: #{tpu_custom_call.1} parent=11 // pred_region
          %s165 = ssub.s32 256, 256
          %166 = vsyncadd [#allocation6], %s165
          %s167 = sshll.u32 [#allocation5], 4
          %s168 = int_to_ptr.vmem [resolvable:$true] %s167
          %173 = dma.hbm_to_vmem [thread:$0]  %s3, 256, %s168, [#allocation6], 128, 128, 8
        $region24: #{tpu_custom_call.1} parent=11 // pred_fallthru
          _
      $region12: #{tpu_custom_call.1} parent=5 // pred_fallthru
        _
      %p174 = scmp.lt.s32.totalorder %s15, 2
      // Predicated region
      $region25: #{tpu_custom_call.1} parent=5 // pred_check
        %p175 = pneg %p174
      $region26: #{tpu_custom_call.1} parent=5 // pred_check_branch
        %177 = sbr.rel (%p175) target = $region28
      $region27: #{tpu_custom_call.1} parent=5 // pred_region
        // Predicated region
        $region29: #{tpu_custom_call.1} parent=27 // pred_check
          %p178 = pneg %p35
        $region30: #{tpu_custom_call.1} parent=27 // pred_check_branch
          %180 = sbr.rel (%p178) target = $region32
        $region31: #{tpu_custom_call.1} parent=27 // pred_region
          %p181 = scmp.lt.s32.totalorder %s15, 1
          %s182 = scalar_select %p181, %s15, 1
          %s183 = smul.addr %s182, 8
          %s184 = scalar_lea.vmem %s0, %s183
        $region32: #{tpu_custom_call.1} parent=27 // pred_fallthru
          _
      $region28: #{tpu_custom_call.1} parent=5 // pred_fallthru
        _
      %p185 = scmp.le.s32.totalorder 1, %s15
      %p186 = scmp.lt.s32.totalorder %s15, 3
      %p187 = pnand %p185, %p186
      %p188 = pneg %p187
      // Predicated region
      $region33: #{tpu_custom_call.1} parent=5 // pred_check
        _
      $region34: #{tpu_custom_call.1} parent=5 // pred_check_branch
        %190 = sbr.rel (%p187) target = $region36
      $region35: #{tpu_custom_call.1} parent=5 // pred_region
        %s191 = ssub.s32 %s15, 1
        // Predicated region
        $region37: #{tpu_custom_call.1} parent=35 // pred_check
          %p192 = pneg %p83
        $region38: #{tpu_custom_call.1} parent=35 // pred_check_branch
          %194 = sbr.rel (%p192) target = $region40
        $region39: #{tpu_custom_call.1} parent=35 // pred_region
          %195 = dma.done [#allocation3], 384
        $region40: #{tpu_custom_call.1} parent=35 // pred_fallthru
          _
        // Predicated region
        $region41: #{tpu_custom_call.1} parent=35 // pred_check
          %p196 = pneg %p104
        $region42: #{tpu_custom_call.1} parent=35 // pred_check_branch
          %198 = sbr.rel (%p196) target = $region44
        $region43: #{tpu_custom_call.1} parent=35 // pred_region
          %199 = dma.done [#allocation6], 256
        $region44: #{tpu_custom_call.1} parent=35 // pred_fallthru
          _
        %p200 = scmp.lt.s32.totalorder %s20, 1
        %s201 = scalar_select %p200, %s20, 1
        %s202 = smul.addr %s201, 8
        %s203 = scalar_lea.vmem %s0, %s202
        %p204 = pneg %p41
        %p205 = pneg %p38
        %p206 = pneg %p62
        %p207 = pneg %p59
        %p208 = pneg %p83
        %p209 = pneg %p80
        %p210 = pneg %p104
        %p211 = pneg %p101
        %p212 = pneg %p130
        %p213 = pneg %p127
        %s214 = sand.u32 %s117, 1
        %s215 = scalar_lea.sflag [#allocation4], %s214
        %s216 = sand.u32 %s117, 1
        %s217 = smul.addr %s216, 8
        %s218 = scalar_lea.vmem [#allocation7], %s217
        %p219 = scmp.lt.s32.totalorder %s20, 1
        %s220 = scalar_select %p219, %s20, 1
        %s221 = smul.addr %s220, 8
        %s222 = scalar_lea.vmem %s0, %s221
        %v223 = vld [vmem:[%s222] sm:$0xff]
        %v224 = vld [vmem:[%s1] sm:$0xff]
        %v225 = vld [vmem:[%s1 + $0x8] sm:$0xff]
        %v226 = vlaneseq
        %v227 = vand.u32 %v226, 127
        %228 = vset.pattern.permute.xlu0 0
        %229 = vperm.xlu0 %228, %v223
        %v230 = vpop.permute.xlu0 %229
        %vm231 = vcmp.eq.s32.totalorder %v227, %v230
        %v232 = vsel %vm231, 1, 0
        %v233 = vcvt.s32.f32 %v232
        %vm234 = vcmask 130048
        %v236 = vsel %vm234, %v233, 0
        %238 = vmatprep.subr.mxu0 0.0
        %239 = vmatpush1.msra.mxu0 0.0
        %240 = vmatprep.subr.mxu0 0.0
        %241 = vmatpush1.msra.mxu0 0.0
        %242 = vmatprep.subr.mxu0 0.0
        %243 = vmatpush1.msra.mxu0 0.0
        %244 = vmatprep.subr.mxu0 0.0
        %245 = vmatpush1.msra.mxu0 0.0
        %246 = vmatprep.subr.mxu0 0.0
        %247 = vmatpush1.msra.mxu0 0.0
        %248 = vmatprep.subr.mxu0 0.0
        %249 = vmatpush1.msra.mxu0 0.0
        %250 = vmatprep.subr.mxu0 0.0
        %251 = vmatpush1.msra.mxu0 0.0
        %252 = vmatprep.subr.mxu0 0.0
        %253 = vmatpush1.msra.mxu0 0.0
        %254 = vmatprep.subr.mxu0 0.0
        %255 = vmatpush1.msra.mxu0 0.0
        %256 = vmatprep.subr.mxu0 0.0
        %257 = vmatpush1.msra.mxu0 0.0
        %258 = vmatprep.subr.mxu0 0.0
        %259 = vmatpush1.msra.mxu0 0.0
        %260 = vmatprep.subr.mxu0 0.0
        %261 = vmatpush1.msra.mxu0 0.0
        %262 = vmatprep.subr.mxu0 0.0
        %263 = vmatpush1.msra.mxu0 0.0
        %264 = vmatprep.subr.mxu0 0.0
        %265 = vmatpush1.msra.mxu0 0.0
        %266 = vmatprep.subr.mxu0 0.0
        %267 = vmatpush1.msra.mxu0 %v225
        %268 = vmatprep.subr.mxu0 0.0
        %269 = vmatpush1.msra.mxu0 %v224
        %270 = vmatprep.subr.mxu0 0.0
        %271 = vmatpush2.msra.mxu0 0.0
        %272 = vmatprep.subr.mxu0 0.0
        %273 = vmatpush2.msra.mxu0 0.0
        %274 = vmatprep.subr.mxu0 0.0
        %275 = vmatpush2.msra.mxu0 0.0
        %276 = vmatprep.subr.mxu0 0.0
        %277 = vmatpush2.msra.mxu0 0.0
        %278 = vmatprep.subr.mxu0 0.0
        %279 = vmatpush2.msra.mxu0 0.0
        %280 = vmatprep.subr.mxu0 0.0
        %281 = vmatpush2.msra.mxu0 0.0
        %282 = vmatprep.subr.mxu0 0.0
        %283 = vmatpush2.msra.mxu0 0.0
        %284 = vmatprep.subr.mxu0 0.0
        %285 = vmatpush2.msra.mxu0 0.0
        %286 = vmatprep.subr.mxu0 0.0
        %287 = vmatpush2.msra.mxu0 0.0
        %288 = vmatprep.subr.mxu0 0.0
        %289 = vmatpush2.msra.mxu0 0.0
        %290 = vmatprep.subr.mxu0 0.0
        %291 = vmatpush2.msra.mxu0 0.0
        %292 = vmatprep.subr.mxu0 0.0
        %293 = vmatpush2.msra.mxu0 0.0
        %294 = vmatprep.subr.mxu0 0.0
        %295 = vmatpush2.msra.mxu0 0.0
        %296 = vmatprep.subr.mxu0 0.0
        %297 = vmatpush2.msra.mxu0 0.0
        %298 = vmatprep.subr.mxu0 0.0
        %299 = vmatpush2.msra.mxu0 0.0
        %300 = vmatprep.subr.mxu0 0.0
        %301 = vmatpush2.msra.mxu0 0.0
        %302 = vmatprep.mubr.f32.mxu0 0.0
        %303 = vmatmul.mubr.f32.gmra.mxu0 %v236
        %v304 = vpop.f32.mrf.mxu0
        %v305 = vadd.f32 0.0, %v304
        %v306 = vpop.f32.mrf.mxu0
        %307 = vdwg.mxu0
        %vm308 = vcmask 261120
        %309 = vst.msk [vmem:[%s218] sm:$0xff] %vm308, %v305
        %v310 = vld [vmem:[#allocation2] sm:$0xff]
        %v311 = vld [vmem:[#allocation2 + $0x8] sm:$0xff]
        %v312 = vld [vmem:[#allocation2 + $0x10] sm:$0xff]
        %313 = vset.pattern.permute.xlu0 1
        %314 = vperm.xlu0 %313, %v223
        %v315 = vpop.permute.xlu0 %314
        %vm316 = vcmp.eq.s32.totalorder %v227, %v315
        %v317 = vsel %vm316, 1, 0
        %v318 = vcvt.s32.f32 %v317
        %vm319 = vcmask 195584
        %v321 = vsel %vm319, %v318, 0
        %323 = vmatprep.subr.mxu0 0.0
        %324 = vmatpush1.msra.mxu0 0.0
        %325 = vmatprep.subr.mxu0 0.0
        %326 = vmatpush1.msra.mxu0 0.0
        %327 = vmatprep.subr.mxu0 0.0
        %328 = vmatpush1.msra.mxu0 0.0
        %329 = vmatprep.subr.mxu0 0.0
        %330 = vmatpush1.msra.mxu0 0.0
        %331 = vmatprep.subr.mxu0 0.0
        %332 = vmatpush1.msra.mxu0 0.0
        %333 = vmatprep.subr.mxu0 0.0
        %334 = vmatpush1.msra.mxu0 0.0
        %335 = vmatprep.subr.mxu0 0.0
        %336 = vmatpush1.msra.mxu0 0.0
        %337 = vmatprep.subr.mxu0 0.0
        %338 = vmatpush1.msra.mxu0 0.0
        %339 = vmatprep.subr.mxu0 0.0
        %340 = vmatpush1.msra.mxu0 0.0
        %341 = vmatprep.subr.mxu0 0.0
        %342 = vmatpush1.msra.mxu0 0.0
        %343 = vmatprep.subr.mxu0 0.0
        %344 = vmatpush1.msra.mxu0 0.0
        %345 = vmatprep.subr.mxu0 0.0
        %346 = vmatpush1.msra.mxu0 0.0
        %347 = vmatprep.subr.mxu0 0.0
        %348 = vmatpush1.msra.mxu0 0.0
        %349 = vmatprep.subr.mxu0 0.0
        %350 = vmatpush1.msra.mxu0 %v312
        %351 = vmatprep.subr.mxu0 0.0
        %352 = vmatpush1.msra.mxu0 %v311
        %353 = vmatprep.subr.mxu0 0.0
        %354 = vmatpush1.msra.mxu0 %v310
        %355 = vmatprep.subr.mxu0 0.0
        %356 = vmatpush2.msra.mxu0 0.0
        %357 = vmatprep.subr.mxu0 0.0
        %358 = vmatpush2.msra.mxu0 0.0
        %359 = vmatprep.subr.mxu0 0.0
        %360 = vmatpush2.msra.mxu0 0.0
        %361 = vmatprep.subr.mxu0 0.0
        %362 = vmatpush2.msra.mxu0 0.0
        %363 = vmatprep.subr.mxu0 0.0
        %364 = vmatpush2.msra.mxu0 0.0
        %365 = vmatprep.subr.mxu0 0.0
        %366 = vmatpush2.msra.mxu0 0.0
        %367 = vmatprep.subr.mxu0 0.0
        %368 = vmatpush2.msra.mxu0 0.0
        %369 = vmatprep.subr.mxu0 0.0
        %370 = vmatpush2.msra.mxu0 0.0
        %371 = vmatprep.subr.mxu0 0.0
        %372 = vmatpush2.msra.mxu0 0.0
        %373 = vmatprep.subr.mxu0 0.0
        %374 = vmatpush2.msra.mxu0 0.0
        %375 = vmatprep.subr.mxu0 0.0
        %376 = vmatpush2.msra.mxu0 0.0
        %377 = vmatprep.subr.mxu0 0.0
        %378 = vmatpush2.msra.mxu0 0.0
        %379 = vmatprep.subr.mxu0 0.0
        %380 = vmatpush2.msra.mxu0 0.0
        %381 = vmatprep.subr.mxu0 0.0
        %382 = vmatpush2.msra.mxu0 0.0
        %383 = vmatprep.subr.mxu0 0.0
        %384 = vmatpush2.msra.mxu0 0.0
        %385 = vmatprep.subr.mxu0 0.0
        %386 = vmatpush2.msra.mxu0 0.0
        %387 = vmatprep.mubr.f32.mxu0 0.0
        %388 = vmatmul.mubr.f32.gmra.mxu0 %v321
        %v389 = vpop.f32.mrf.mxu0
        %v390 = vadd.f32 0.0, %v389
        %v391 = vpop.f32.mrf.mxu0
        %392 = vdwg.mxu0
        %394 = vrot.lane.b32.xlu0 %v390, 32
        %v395 = vpop.permute.xlu0 %394
        %vm397 = vcmask 523520
        %398 = vst.msk [vmem:[%s218] sm:$0xff] %vm397, %v395
        %v399 = vld [vmem:[#allocation5] sm:$0xff]
        %v400 = vld [vmem:[#allocation5 + $0x8] sm:$0xff]
        %401 = vset.pattern.permute.xlu0 2
        %402 = vperm.xlu0 %401, %v223
        %v403 = vpop.permute.xlu0 %402
        %vm404 = vcmp.eq.s32.totalorder %v227, %v403
        %v405 = vsel %vm404, 1, 0
        %v406 = vcvt.s32.f32 %v405
        %v408 = vsel %vm234, %v406, 0
        %410 = vmatprep.subr.mxu0 0.0
        %411 = vmatpush1.msra.mxu0 0.0
        %412 = vmatprep.subr.mxu0 0.0
        %413 = vmatpush1.msra.mxu0 0.0
        %414 = vmatprep.subr.mxu0 0.0
        %415 = vmatpush1.msra.mxu0 0.0
        %416 = vmatprep.subr.mxu0 0.0
        %417 = vmatpush1.msra.mxu0 0.0
        %418 = vmatprep.subr.mxu0 0.0
        %419 = vmatpush1.msra.mxu0 0.0
        %420 = vmatprep.subr.mxu0 0.0
        %421 = vmatpush1.msra.mxu0 0.0
        %422 = vmatprep.subr.mxu0 0.0
        %423 = vmatpush1.msra.mxu0 0.0
        %424 = vmatprep.subr.mxu0 0.0
        %425 = vmatpush1.msra.mxu0 0.0
        %426 = vmatprep.subr.mxu0 0.0
        %427 = vmatpush1.msra.mxu0 0.0
        %428 = vmatprep.subr.mxu0 0.0
        %429 = vmatpush1.msra.mxu0 0.0
        %430 = vmatprep.subr.mxu0 0.0
        %431 = vmatpush1.msra.mxu0 0.0
        %432 = vmatprep.subr.mxu0 0.0
        %433 = vmatpush1.msra.mxu0 0.0
        %434 = vmatprep.subr.mxu0 0.0
        %435 = vmatpush1.msra.mxu0 0.0
        %436 = vmatprep.subr.mxu0 0.0
        %437 = vmatpush1.msra.mxu0 0.0
        %438 = vmatprep.subr.mxu0 0.0
        %439 = vmatpush1.msra.mxu0 %v400
        %440 = vmatprep.subr.mxu0 0.0
        %441 = vmatpush1.msra.mxu0 %v399
        %442 = vmatprep.subr.mxu0 0.0
        %443 = vmatpush2.msra.mxu0 0.0
        %444 = vmatprep.subr.mxu0 0.0
        %445 = vmatpush2.msra.mxu0 0.0
        %446 = vmatprep.subr.mxu0 0.0
        %447 = vmatpush2.msra.mxu0 0.0
        %448 = vmatprep.subr.mxu0 0.0
        %449 = vmatpush2.msra.mxu0 0.0
        %450 = vmatprep.subr.mxu0 0.0
        %451 = vmatpush2.msra.mxu0 0.0
        %452 = vmatprep.subr.mxu0 0.0
        %453 = vmatpush2.msra.mxu0 0.0
        %454 = vmatprep.subr.mxu0 0.0
        %455 = vmatpush2.msra.mxu0 0.0
        %456 = vmatprep.subr.mxu0 0.0
        %457 = vmatpush2.msra.mxu0 0.0
        %458 = vmatprep.subr.mxu0 0.0
        %459 = vmatpush2.msra.mxu0 0.0
        %460 = vmatprep.subr.mxu0 0.0
        %461 = vmatpush2.msra.mxu0 0.0
        %462 = vmatprep.subr.mxu0 0.0
        %463 = vmatpush2.msra.mxu0 0.0
        %464 = vmatprep.subr.mxu0 0.0
        %465 = vmatpush2.msra.mxu0 0.0
        %466 = vmatprep.subr.mxu0 0.0
        %467 = vmatpush2.msra.mxu0 0.0
        %468 = vmatprep.subr.mxu0 0.0
        %469 = vmatpush2.msra.mxu0 0.0
        %470 = vmatprep.subr.mxu0 0.0
        %471 = vmatpush2.msra.mxu0 0.0
        %472 = vmatprep.subr.mxu0 0.0
        %473 = vmatpush2.msra.mxu0 0.0
        %474 = vmatprep.mubr.f32.mxu0 0.0
        %475 = vmatmul.mubr.f32.gmra.mxu0 %v408
        %v476 = vpop.f32.mrf.mxu0
        %v477 = vadd.f32 0.0, %v476
        %v478 = vpop.f32.mrf.mxu0
        %479 = vdwg.mxu0
        %481 = vrot.lane.b32.xlu0 %v477, 64
        %v482 = vpop.permute.xlu0 %481
        %vm484 = vcmask 785920
        %485 = vst.msk [vmem:[%s218] sm:$0xff] %vm484, %v482
        %s486 = sand.u32 %s117, 1
        %s487 = scalar_lea.sflag [#allocation4], %s486
        %s488 = sand.u32 %s117, 1
        %s489 = smul.addr %s488, 8
        %s490 = scalar_lea.vmem [#allocation7], %s489
        // Predicated region
        $region45: #{tpu_custom_call.1} parent=35 // pred_check
          %p491 = pneg %p127
        $region46: #{tpu_custom_call.1} parent=35 // pred_check_branch
          %493 = sbr.rel (%p491) target = $region48
        $region47: #{tpu_custom_call.1} parent=35 // pred_region
          %s495 = ssub.s32 128, 128
          %496 = vsyncadd %s487, %s495
          %s497 = smul.addr %s20, 128
          %s498 = scalar_lea.hbm %s4, %s497
          %s500 = sshll.u32 %s490, 4
          %s501 = int_to_ptr.vmem [resolvable:$true] %s500
          %503 = dma.vmem_to_hbm [thread:$0]  %s501, 128, %s498, %s487
        $region48: #{tpu_custom_call.1} parent=35 // pred_fallthru
          _
      $region36: #{tpu_custom_call.1} parent=5 // pred_fallthru
        _
      %p504 = scmp.le.s32.totalorder 2, %s15
      // Predicated region
      $region49: #{tpu_custom_call.1} parent=5 // pred_check
        %p505 = pneg %p504
      $region50: #{tpu_custom_call.1} parent=5 // pred_check_branch
        %507 = sbr.rel (%p505) target = $region52
      $region51: #{tpu_custom_call.1} parent=5 // pred_region
        %s508 = ssub.s32 %s15, 2
        // Predicated region
        $region53: #{tpu_custom_call.1} parent=51 // pred_check
          %p509 = pneg %p133
        $region54: #{tpu_custom_call.1} parent=51 // pred_check_branch
          %511 = sbr.rel (%p509) target = $region56
        $region55: #{tpu_custom_call.1} parent=51 // pred_region
          %s512 = sand.u32 %s118, 1
          %s513 = scalar_lea.sflag [#allocation4], %s512
          %s514 = sand.u32 %s118, 1
          %s515 = smul.addr %s514, 8
          %s516 = scalar_lea.vmem [#allocation7], %s515
          %517 = dma.done %s513, 128
        $region56: #{tpu_custom_call.1} parent=51 // pred_fallthru
          _
      $region52: #{tpu_custom_call.1} parent=5 // pred_fallthru
        _
    $region6: #{tpu_custom_call.1} parent=1 // loop_footer
      %s19 = sadd.s32 1, %s15
    $region7: #{tpu_custom_call.1} parent=1 // loop_footer_branch
      %14 = sbr.rel target = $region3
    $region8: #{tpu_custom_call.1} parent=1 // loop_exit
      _
    %518 = vsyncpa [#allocation3], 1
    %s519 = scalar_lea.sflag [#allocation3], 1
    %520 = vsyncpa %s519, 1
    %521 = vsyncpa [#allocation6], 1
    %522 = vsyncpa [#allocation4], 1
    %s523 = scalar_lea.sflag [#allocation4], 1
    %524 = vsyncpa %s523, 1

</llo_original>
